<compile_context>
chip_gen: v7x
topology: tpu7x:2x2x1
jax: 0.10.0
libtpu: 0.0.40
codegen_flags: <defaults>
</compile_context>

<pallas_src>
import jax
import jax.numpy as jnp
from jax.experimental import pallas as pl
from jax.experimental.pallas import tpu as pltpu

_SUB = 8                    # f32 sublanes per vreg
_LANE = 128                 # lanes per vreg
_GRANULE = _SUB * _LANE     # 1024: minimum column-tile width


def _linear_vpu_kernel(x_ref, w_ref, b_ref, o_ref):
    """One batch tile of nn.Linear(3, 1) on the VPU.

    x_ref: (3, 8, L) f32 VMEM  -- features on axis 0, batch on (sublane, lane)
    w_ref: (3,)      f32 SMEM  -- scalar weight reads
    b_ref: (1,)      f32 SMEM
    o_ref: (8, L)    f32 VMEM  -- sublane+lane-dense output tile
    """
    acc = (x_ref[0] * w_ref[0]
           + x_ref[1] * w_ref[1]
           + x_ref[2] * w_ref[2]
           + b_ref[0])
    o_ref[...] = acc.astype(o_ref.dtype)


def _round_up(a, b):
    return (a + b - 1) // b * b


def poly_model_forward(x, weight, bias, *, tn_max=256 * 1024,
                       min_pallas_n=64 * 1024):
    """Forward pass of poly_model: x @ weight.T + bias.

    x: (N, 3) f32; weight: (1, 3) f32; bias: (1,) f32.  Returns (N, 1) f32.
    """
    n, k = x.shape
    assert k == 3 and weight.shape == (1, 3) and bias.shape == (1,)

    # Small-N fast path: a single fused XLA op beats kernel dispatch + layout
    # copies until HBM traffic reaches the MB range.
    if n < min_pallas_n:
        return x @ weight.T + bias

    # --- Tile / grid selection -------------------------------------------
    tn_max = _round_up(max(int(tn_max), _GRANULE), _GRANULE)
    if n > 16 * 1024:
        # Force >= 2 blocks so v7x's two TensorCores both get work (batch axis
        # is "parallel"); the extra ~0.35 us/step on single-TC parts is
        # negligible at these sizes and enables DMA/compute overlap.
        n_blocks = max(2, pl.cdiv(n, tn_max))
    else:
        n_blocks = pl.cdiv(n, tn_max)
    tn = min(tn_max, _round_up(pl.cdiv(n, n_blocks), _GRANULE))
    n_blocks = pl.cdiv(n, tn)
    n_pad = n_blocks * tn
    lanes = tn // _SUB          # multiple of 128 by construction

    # --- Layout: one fused transpose + pad + reshape to sublane-dense 4-D --
    pad = n_pad - n
    xt = x.T                                       # (3, N), rows contiguous
    if pad:
        xt = jnp.pad(xt, ((0, 0), (0, pad)))       # fused with the transpose
    xt = xt.reshape(3, n_blocks, _SUB, lanes)      # free: data is contiguous

    w_flat = weight.reshape(3).astype(jnp.float32)   # 3 scalars for SMEM
    b_flat = bias.reshape(1).astype(jnp.float32)

    out_pad = pl.pallas_call(
        _linear_vpu_kernel,
        out_shape=jax.ShapeDtypeStruct((n_blocks, _SUB, lanes), x.dtype),
        grid=(n_blocks,),
        in_specs=[
            pl.BlockSpec((3, None, _SUB, lanes), lambda i: (0, i, 0, 0)),
            pl.BlockSpec(memory_space=pltpu.MemorySpace.SMEM),   # weight
            pl.BlockSpec(memory_space=pltpu.MemorySpace.SMEM),   # bias
        ],
        out_specs=pl.BlockSpec((None, _SUB, lanes), lambda i: (i, 0, 0)),
        compiler_params=pltpu.CompilerParams(
            dimension_semantics=("parallel",),   # shard batch across TCs (v7x)
            vmem_limit_bytes=32 * 1024 * 1024,
        ),
    )(xt, w_flat, b_flat)

    # Undo the layout: (n_blocks, 8, L) -> (n_pad,) restores batch order; the
    # final reshape to (N, 1) is a free bitcast when n == n_pad.
    out = out_pad.reshape(n_pad)
    if pad:
        out = out[:n]
    return out.reshape(n, 1)


if __name__ == "__main__":
    key = jax.random.PRNGKey(0)
    kx, kw, kb, kx2 = jax.random.split(key, 4)

    # nn.Linear(3, 1) default init: U(-1/sqrt(3), 1/sqrt(3)).
    bound = 1.0 / jnp.sqrt(3.0)
    weight = jax.random.uniform(kw, (1, 3), dtype=jnp.float32,
                                minval=-bound, maxval=bound)
    bias = jax.random.uniform(kb, (1,), dtype=jnp.float32,
                              minval=-bound, maxval=bound)

    # Case 1: tiny batch of polynomial features (x, x^2, x^3) -> small-N
    # fast path (plain fused jnp, no kernel dispatch).
    x = jax.random.normal(kx, (8, 3), dtype=jnp.float32)
    ref = x @ weight.T + bias
    out = jax.block_until_ready(poly_model_forward(x, weight, bias))
    assert out.shape == (8, 1)
    assert jnp.allclose(out, ref, atol=1e-5, rtol=1e-5)

    # Case 2: force the Pallas path at the same tiny batch (single padded
    # 1024-column tile) to validate the kernel itself.
    out_p = jax.block_until_ready(
        poly_model_forward(x, weight, bias, min_pallas_n=0))
    assert out_p.shape == (8, 1)
    assert jnp.allclose(out_p, ref, atol=1e-5, rtol=1e-5)

    # Case 3: Pallas path with several grid blocks and a ragged final tile
    # (N=2500, tn_max=1024 -> 3 blocks of 1024 columns, 572 pad columns).
    x2 = jax.random.normal(kx2, (2500, 3), dtype=jnp.float32)
    ref2 = x2 @ weight.T + bias
    out2 = jax.block_until_ready(
        poly_model_forward(x2, weight, bias, tn_max=1024, min_pallas_n=0))
    assert out2.shape == (2500, 1)
    assert jnp.allclose(out2, ref2, atol=1e-5, rtol=1e-5)

    print("KERNEL_OK")
</pallas_src>

<mosaic_0001>
module attributes {stable_mosaic.version = 11 : i64} {
  func.func @_linear_vpu_kernel(%arg0: i32, %arg1: memref<3x1x8x128xf32, #tpu.memory_space<vmem>>, %arg2: memref<3xf32, #tpu.memory_space<smem>>, %arg3: memref<1xf32, #tpu.memory_space<smem>>, %arg4: memref<1x8x128xf32, #tpu.memory_space<vmem>>) attributes {dimension_semantics = [#tpu.dimension_semantics<parallel>], iteration_bounds = array<i64: 1>, scalar_prefetch = 0 : i64, scratch_operands = 0 : i64, tpu.core_type = #tpu.core_type<tc>, window_params = [{transform_indices = @transform_0, window_bounds = array<i64: 3, 1, 8, 128>}, {transform_indices = @transform_1, window_bounds = array<i64: 3>}, {transform_indices = @transform_2, window_bounds = array<i64: 1>}, {transform_indices = @transform_3, window_bounds = array<i64: 1, 8, 128>}]} {
    %c0 = arith.constant 0 : index
    %c0_0 = arith.constant 0 : index
    %c0_1 = arith.constant 0 : index
    %c0_2 = arith.constant 0 : index
    %0 = vector.load %arg1[%c0, %c0_0, %c0_1, %c0_2] : memref<3x1x8x128xf32, #tpu.memory_space<vmem>>, vector<1x1x8x128xf32>
    %1 = vector.shape_cast %0 : vector<1x1x8x128xf32> to vector<8x128xf32>
    %c0_3 = arith.constant 0 : index
    %2 = memref.load %arg2[%c0_3] : memref<3xf32, #tpu.memory_space<smem>>
    %3 = vector.broadcast %2 : f32 to vector<8x128xf32>
    %4 = arith.mulf %1, %3 : vector<8x128xf32>
    %c1 = arith.constant 1 : index
    %c0_4 = arith.constant 0 : index
    %c0_5 = arith.constant 0 : index
    %c0_6 = arith.constant 0 : index
    %5 = vector.load %arg1[%c1, %c0_4, %c0_5, %c0_6] : memref<3x1x8x128xf32, #tpu.memory_space<vmem>>, vector<1x1x8x128xf32>
    %6 = vector.shape_cast %5 : vector<1x1x8x128xf32> to vector<8x128xf32>
    %c1_7 = arith.constant 1 : index
    %7 = memref.load %arg2[%c1_7] : memref<3xf32, #tpu.memory_space<smem>>
    %8 = vector.broadcast %7 : f32 to vector<8x128xf32>
    %9 = arith.mulf %6, %8 : vector<8x128xf32>
    %10 = arith.addf %4, %9 : vector<8x128xf32>
    %c2 = arith.constant 2 : index
    %c0_8 = arith.constant 0 : index
    %c0_9 = arith.constant 0 : index
    %c0_10 = arith.constant 0 : index
    %11 = vector.load %arg1[%c2, %c0_8, %c0_9, %c0_10] : memref<3x1x8x128xf32, #tpu.memory_space<vmem>>, vector<1x1x8x128xf32>
    %12 = vector.shape_cast %11 : vector<1x1x8x128xf32> to vector<8x128xf32>
    %c2_11 = arith.constant 2 : index
    %13 = memref.load %arg2[%c2_11] : memref<3xf32, #tpu.memory_space<smem>>
    %14 = vector.broadcast %13 : f32 to vector<8x128xf32>
    %15 = arith.mulf %12, %14 : vector<8x128xf32>
    %16 = arith.addf %10, %15 : vector<8x128xf32>
    %c0_12 = arith.constant 0 : index
    %17 = memref.load %arg3[%c0_12] : memref<1xf32, #tpu.memory_space<smem>>
    %18 = vector.broadcast %17 : f32 to vector<8x128xf32>
    %19 = arith.addf %16, %18 : vector<8x128xf32>
    %c0_13 = arith.constant 0 : index
    %c0_14 = arith.constant 0 : index
    %c0_15 = arith.constant 0 : index
    %20 = vector.load %arg4[%c0_13, %c0_14, %c0_15] : memref<1x8x128xf32, #tpu.memory_space<vmem>>, vector<1x8x128xf32>
    %21 = vector.shape_cast %20 : vector<1x8x128xf32> to vector<8x128xf32>
    %22 = vector.shape_cast %19 : vector<8x128xf32> to vector<1x8x128xf32>
    tpu.vector_store %arg4[%c0_13, %c0_14, %c0_15], %22 {strides = array<i32>} : memref<1x8x128xf32, #tpu.memory_space<vmem>>, vector<1x8x128xf32>,
    return
  }
  func.func @transform_0(%arg0: i32) -> (i32, i32, i32, i32) {
    %c0_i32 = arith.constant 0 : i32
    %c0_i32_0 = arith.constant 0 : i32
    %c0_i32_1 = arith.constant 0 : i32
    %c0_i32_2 = arith.constant 0 : i32
    return %c0_i32, %arg0, %c0_i32_0, %c0_i32_1 : i32, i32, i32, i32
  }
  func.func @transform_1(%arg0: i32) -> i32 {
    %c0_i32 = arith.constant 0 : i32
    %c0_i32_0 = arith.constant 0 : i32
    return %c0_i32 : i32
  }
  func.func @transform_2(%arg0: i32) -> i32 {
    %c0_i32 = arith.constant 0 : i32
    %c0_i32_0 = arith.constant 0 : i32
    return %c0_i32 : i32
  }
  func.func @transform_3(%arg0: i32) -> (i32, i32, i32) {
    %c0_i32 = arith.constant 0 : i32
    %c0_i32_0 = arith.constant 0 : i32
    %c0_i32_1 = arith.constant 0 : i32
    return %arg0, %c0_i32, %c0_i32_0 : i32, i32, i32
  }
}

</mosaic_0001>

<llo_original>
// kernel: tpu_custom_call.1
$region0: #{tpu_custom_call.1}
  #allocation0 [shape = 'u32[]', space=smem, size = 0x4, offset = 0x4, fixed_abs, tag = 'smem constant byte address 0x4 - core index']
  #allocation1 [shape = 'u32[144,128]{1,0:T(1,128)}', space=vmem, size = 0x12000, scoped, tag = 'internal scratch']
  #allocation2 [shape = 'f32[1]{0:T(128)S(6)}', space=smem, size = 0x200, scoped, tag = 'scoped memory for tpu_custom_call.1']
  %s0 = inlined_call_operand.hbm [shape: f32[3,1,8,128], index: 0, kind: input, shape index: {}]
  %s1 = inlined_call_operand.vmem [shape: f32[3], index: 1, kind: input, shape index: {}]
  %s2 = inlined_call_operand.<no memory space> [shape: f32[1], index: 2, kind: input, shape index: {}]
  %s3 = inlined_call_operand.hbm [shape: f32[1,8,128], index: 3, kind: output, shape index: {}]
  %s4 = sld [smem:[#allocation0]]
  $region30: #{tpu_custom_call.1} parent=0
    _
  %s6 = ssub.s32 1, %s4
  %s7 = scalar_select 0, %s6, %s4
  %8 = sst [smem:[#allocation2]] %s2
  $region1: #{tpu_custom_call.1} parent=0
    #allocation3 [shape = 'u8[12288]{0}', space=vmem, size = 0x3000, scoped, tag = 'input window, operand 0, single buffered']
    #allocation4 [shape = 's32[1]{0}', space=sflag, size = 0x4, scoped, tag = 'scoped memory for tpu_custom_call.1']
    #allocation5 [shape = 's32[1]{0}', space=sflag, size = 0x4, scoped, tag = 'scoped memory for tpu_custom_call.1']
    #allocation6 [shape = 's32[1]{0}', space=sflag, size = 0x4, scoped, tag = 'scoped memory for tpu_custom_call.1']
    #allocation7 [shape = 'u8[512]{0}', space=smem, size = 0x200, scoped, tag = 'input window, operand 1, single buffered']
    #allocation8 [shape = 'u8[4096]{0}', space=vmem, size = 0x1000, scoped, tag = 'output window, operand 0, single buffered']
    %9 = vsyncpa [#allocation4], 0
    %10 = vsyncpa [#allocation6], 0
    %11 = vsyncpa [#allocation5], 0
    // Predicated region
    $region2: #{tpu_custom_call.1} parent=1 // pred_check
      _
    $region3: #{tpu_custom_call.1} parent=1 // pred_check_branch
      %13 = sbr.rel (0) target = $region5
    $region4: #{tpu_custom_call.1} parent=1 // pred_region
      %s15 = ssub.s32 384, 384
      %16 = vsyncadd [#allocation4], %s15
      %s17 = sshll.u32 [#allocation3], 4
      %s18 = int_to_ptr.vmem [resolvable:$true] %s17
      %23 = dma.hbm_to_vmem [thread:$0]  %s0, 384, %s18, [#allocation4], 128, 128, 8
    $region5: #{tpu_custom_call.1} parent=1 // pred_fallthru
      _
    // Predicated region
    $region6: #{tpu_custom_call.1} parent=1 // pred_check
      _
    $region7: #{tpu_custom_call.1} parent=1 // pred_check_branch
      %25 = sbr.rel (0) target = $region9
    $region8: #{tpu_custom_call.1} parent=1 // pred_region
      %s27 = ssub.s32 16, 16
      %28 = vsyncadd [#allocation6], %s27
      %s30 = sshll.u32 %s1, 4
      %s31 = int_to_ptr.vmem [resolvable:$true] %s30
      %33 = dma.vmem_to_smem %s31, 16, [#allocation7], [#allocation6]
    $region9: #{tpu_custom_call.1} parent=1 // pred_fallthru
      _
    // Predicated region
    $region10: #{tpu_custom_call.1} parent=1 // pred_check
      _
    $region11: #{tpu_custom_call.1} parent=1 // pred_check_branch
      %35 = sbr.rel (0) target = $region13
    $region12: #{tpu_custom_call.1} parent=1 // pred_region
      _
    $region13: #{tpu_custom_call.1} parent=1 // pred_fallthru
      _
    // Predicated region
    $region14: #{tpu_custom_call.1} parent=1 // pred_check
      _
    $region15: #{tpu_custom_call.1} parent=1 // pred_check_branch
      %37 = sbr.rel (0) target = $region17
    $region16: #{tpu_custom_call.1} parent=1 // pred_region
      %38 = dma.done [#allocation4], 384
    $region17: #{tpu_custom_call.1} parent=1 // pred_fallthru
      _
    // Predicated region
    $region18: #{tpu_custom_call.1} parent=1 // pred_check
      _
    $region19: #{tpu_custom_call.1} parent=1 // pred_check_branch
      %40 = sbr.rel (0) target = $region21
    $region20: #{tpu_custom_call.1} parent=1 // pred_region
      %41 = dma.done [#allocation6], 16
    $region21: #{tpu_custom_call.1} parent=1 // pred_fallthru
      _
    %42 = sfence
    %v43 = vld [vmem:[#allocation3] sm:$0xff]
    %s44 = sld [smem:[#allocation7]]
    %v45 = vstv %s44
    %v46 = vmul.f32 %v43, %v45
    %s47 = scalar_lea.vmem [#allocation3], 8
    %v48 = vld [vmem:[%s47] sm:$0xff]
    %s49 = sld [smem:[#allocation7 + $0x1]]
    %v50 = vstv %s49
    %v51 = vmul.f32 %v48, %v50
    %v52 = vadd.f32 %v46, %v51
    %s53 = scalar_lea.vmem [#allocation3], 16
    %v54 = vld [vmem:[%s53] sm:$0xff]
    %s55 = sld [smem:[#allocation7 + $0x2]]
    %v56 = vstv %s55
    %v57 = vmul.f32 %v54, %v56
    %v58 = vadd.f32 %v52, %v57
    %s59 = sld [smem:[#allocation2]]
    %v60 = vstv %s59
    %v61 = vadd.f32 %v58, %v60
    %62 = vst [vmem:[#allocation8] sm:$0xff] %v61
    // Predicated region
    $region22: #{tpu_custom_call.1} parent=1 // pred_check
      _
    $region23: #{tpu_custom_call.1} parent=1 // pred_check_branch
      %64 = sbr.rel (0) target = $region25
    $region24: #{tpu_custom_call.1} parent=1 // pred_region
      %s66 = ssub.s32 128, 128
      %67 = vsyncadd [#allocation5], %s66
      %s69 = sshll.u32 [#allocation8], 4
      %s70 = int_to_ptr.vmem [resolvable:$true] %s69
      %72 = dma.vmem_to_hbm [thread:$0]  %s70, 128, %s3, [#allocation5]
    $region25: #{tpu_custom_call.1} parent=1 // pred_fallthru
      _
    // Predicated region
    $region26: #{tpu_custom_call.1} parent=1 // pred_check
      _
    $region27: #{tpu_custom_call.1} parent=1 // pred_check_branch
      %74 = sbr.rel (0) target = $region29
    $region28: #{tpu_custom_call.1} parent=1 // pred_region
      %75 = dma.done [#allocation5], 128
    $region29: #{tpu_custom_call.1} parent=1 // pred_fallthru
      _
    %76 = vsyncpa [#allocation4], 1
    %77 = vsyncpa [#allocation5], 1
    %78 = vsyncpa [#allocation6], 1

</llo_original>
